<compile_context>
chip_gen: v7x
topology: tpu7x:2x2x1
jax: 0.10.0
libtpu: 0.0.40
codegen_flags: <defaults>
</compile_context>

<pallas_src>
from typing import NamedTuple

import jax
import jax.numpy as jnp
from jax.experimental import pallas as pl
from jax.experimental.pallas import tpu as pltpu


def _round_up(x, m):
    return ((x + m - 1) // m) * m


def _cdiv(a, b):
    return -(-a // b)


def _vmem_capacity_bytes():
    """Physical per-core VMEM (generation-aware); conservative fallback."""
    try:
        info = pltpu.get_tpu_info()
        cap = getattr(info, "vmem_capacity_bytes", None)
        if cap:
            return int(cap)
    except Exception:
        pass
    return 64 * 1024 * 1024  # conservative (v7x per-TC); v5e/v6e have 128 MiB


# --------------------------------------------------------------------------
# Kernels
# --------------------------------------------------------------------------
def _mlp_kernel_fused(x_ref, w1_ref, b1_ref, w2_ref, b2_ref, o_ref):
    """Single hidden chunk (weight-resident path): whole MLP in one shot."""
    h = jnp.dot(x_ref[...], w1_ref[...], preferred_element_type=jnp.float32)
    h = jnp.maximum(h + b1_ref[...], 0.0)                      # biases are f32
    y = jnp.dot(h.astype(w2_ref.dtype), w2_ref[...],
                preferred_element_type=jnp.float32)
    o_ref[...] = (y + b2_ref[...]).astype(o_ref.dtype)


def _mlp_kernel_tiled_f32out(x_ref, w1_ref, b1_ref, w2_ref, b2_ref, o_ref):
    """Hidden axis tiled; f32 output accumulates directly into o_ref."""
    k = pl.program_id(1)
    h = jnp.dot(x_ref[...], w1_ref[...], preferred_element_type=jnp.float32)
    h = jnp.maximum(h + b1_ref[...], 0.0)
    p = jnp.dot(h.astype(w2_ref.dtype), w2_ref[...],
                preferred_element_type=jnp.float32)

    @pl.when(k == 0)
    def _():
        o_ref[...] = p + b2_ref[...]

    @pl.when(k != 0)
    def _():
        o_ref[...] += p


def _mlp_kernel_tiled_scratch(x_ref, w1_ref, b1_ref, w2_ref, b2_ref, o_ref,
                              acc_ref):
    """Hidden axis tiled; low-precision output -> f32 VMEM accumulator."""
    k = pl.program_id(1)

    @pl.when(k == 0)
    def _():
        acc_ref[...] = jnp.zeros_like(acc_ref)

    h = jnp.dot(x_ref[...], w1_ref[...], preferred_element_type=jnp.float32)
    h = jnp.maximum(h + b1_ref[...], 0.0)
    acc_ref[...] += jnp.dot(h.astype(w2_ref.dtype), w2_ref[...],
                            preferred_element_type=jnp.float32)

    @pl.when(k == pl.num_programs(1) - 1)
    def _():
        o_ref[...] = (acc_ref[...] + b2_ref[...]).astype(o_ref.dtype)


# --------------------------------------------------------------------------
# Parameter preparation (pad / cast once, not per forward call)
# --------------------------------------------------------------------------
class MLPParams(NamedTuple):
    w1: jax.Array      # (in_dim, hid_p)   compute dtype
    b1: jax.Array      # (1, hid_p)        f32
    w2: jax.Array      # (hid_p, out_p)    compute dtype
    b2: jax.Array      # (1, out_p)        f32
    out_dim: int       # static
    th: int            # static: hidden chunk size (multiple of 128)


def prepare_mlp_params(w1, b1, w2, b2, *, compute_dtype=None,
                       hidden_tile_cap=None):
    """Pad / cast the weights once.  Call at parameter-setup time.

    compute_dtype: e.g. jnp.bfloat16 runs both matmuls at MXU bf16 rate
                   (accumulation stays f32); recommended on v5e.
    hidden_tile_cap: optional upper bound on the hidden chunk (testing / very
                   large hidden dims).
    """
    in_dim, hidden = w1.shape
    out_dim = w2.shape[1]
    cdt = compute_dtype if compute_dtype is not None else w1.dtype

    cap = int(0.85 * _vmem_capacity_bytes())
    out_p = _round_up(out_dim, 128)
    w_item = jnp.dtype(cdt).itemsize

    # Hidden chunk: prefer a single (weight-resident) chunk; only tile the
    # hidden axis when the double-buffered W1/W2 chunks exceed ~45% of VMEM.
    th = _round_up(hidden, 128)
    if hidden_tile_cap is not None:
        th = min(th, _round_up(hidden_tile_cap, 128))
    weight_budget = int(0.45 * cap)
    while th > 128 and 2 * (in_dim * th + th * out_p) * w_item > weight_budget:
        th = _round_up(th // 2, 128)
    hid_p = _round_up(hidden, th)

    # Zero padding is exact: padded hidden units give ReLU(0)=0 against zero
    # W2 rows; padded outputs are sliced off in the wrapper.
    w1p = jnp.pad(w1.astype(cdt), ((0, 0), (0, hid_p - hidden)))
    b1p = jnp.pad(jnp.reshape(b1, (1, hidden)).astype(jnp.float32),
                  ((0, 0), (0, hid_p - hidden)))
    w2p = jnp.pad(w2.astype(cdt), ((0, hid_p - hidden), (0, out_p - out_dim)))
    b2p = jnp.pad(jnp.reshape(b2, (1, out_dim)).astype(jnp.float32),
                  ((0, 0), (0, out_p - out_dim)))
    return MLPParams(w1p, b1p, w2p, b2p, out_dim, th)


# --------------------------------------------------------------------------
# Forward
# --------------------------------------------------------------------------
def mlp_forward(x, params: MLPParams, *, tm=512, allow_fallback=True,
                out_dtype=None):
    """Fused Linear -> ReLU -> Linear on pre-padded params."""
    w1p, b1p, w2p, b2p, out_dim, th = params
    B, in_dim = x.shape
    hid_p = w1p.shape[1]
    out_p = w2p.shape[1]
    cdt = w1p.dtype
    out_dtype = out_dtype if out_dtype is not None else x.dtype
    xk = x.astype(cdt)

    # ---- small-problem fallback: padding + launch overhead would dominate
    flops = 2 * B * (in_dim * hid_p + hid_p * out_p)
    if allow_fallback and flops < 2_000_000:
        h = jnp.maximum(
            jnp.dot(xk, w1p, preferred_element_type=jnp.float32) + b1p, 0.0)
        y = jnp.dot(h.astype(cdt), w2p,
                    preferred_element_type=jnp.float32) + b2p
        return y[:, :out_dim].astype(out_dtype)

    cap = int(0.85 * _vmem_capacity_bytes())
    n_k = hid_p // th
    use_scratch = (n_k > 1) and (jnp.dtype(out_dtype) != jnp.dtype(jnp.float32))

    # ---- batch tile selection
    B8 = _round_up(B, 8)
    tm_eff = max(8, min(_round_up(tm, 8), B8))
    # Guarantee >=2 batch tiles for non-tiny batches so the "parallel" grid
    # axis can be sharded across v7x's two TensorCores (weights are resident /
    # streamed once per tile anyway, so this costs nothing on v5e/v6e).
    if B8 >= 128 and _cdiv(B8, tm_eff) < 2:
        tm_eff = _round_up(_cdiv(B, 2), 8)

    x_item = jnp.dtype(cdt).itemsize
    o_item = jnp.dtype(out_dtype).itemsize

    def vmem_bytes(m):
        # BlockSpec inputs/outputs are double-buffered; + f32 h intermediate
        # (+ f32 accumulator scratch when the output is low-precision).
        w = 2 * (in_dim * th + th * out_p) * x_item + 2 * (th + out_p) * 4
        xs = 2 * m * in_dim * x_item
        os = 2 * m * out_p * o_item
        hb = m * th * 4
        acc = m * out_p * 4 if use_scratch else 0
        return w + xs + os + hb + acc

    while vmem_bytes(tm_eff) > cap and tm_eff > 8:
        tm_eff = max(8, _round_up(tm_eff // 2, 8))

    B_pad = _round_up(B, tm_eff)
    grid_i = B_pad // tm_eff
    x_p = jnp.pad(xk, ((0, B_pad - B), (0, 0)))   # batch tail only; in_dim kept

    vmem_limit = int(min(_vmem_capacity_bytes(),
                         max(32 * 1024 * 1024,
                             vmem_bytes(tm_eff) + (8 << 20))))

    if n_k == 1:
        # Weight-resident fast path: weight block indices are constant over
        # the whole grid, so W1/W2/b1/b2 are DMA'd exactly once.
        out = pl.pallas_call(
            _mlp_kernel_fused,
            out_shape=jax.ShapeDtypeStruct((B_pad, out_p), out_dtype),
            grid_spec=pltpu.PrefetchScalarGridSpec(
                num_scalar_prefetch=0,
                grid=(grid_i,),
                in_specs=[
                    pl.BlockSpec((tm_eff, in_dim), lambda i: (i, 0)),  # x tile
                    pl.BlockSpec((in_dim, hid_p),  lambda i: (0, 0)),  # W1 (resident)
                    pl.BlockSpec((1, hid_p),       lambda i: (0, 0)),  # b1
                    pl.BlockSpec((hid_p, out_p),   lambda i: (0, 0)),  # W2 (resident)
                    pl.BlockSpec((1, out_p),       lambda i: (0, 0)),  # b2
                ],
                out_specs=pl.BlockSpec((tm_eff, out_p), lambda i: (i, 0)),
            ),
            compiler_params=pltpu.CompilerParams(
                dimension_semantics=("parallel",),
                vmem_limit_bytes=vmem_limit,
            ),
        )(x_p, w1p, b1p, w2p, b2p)
    else:
        in_specs = [
            pl.BlockSpec((tm_eff, in_dim), lambda i, k: (i, 0)),  # x tile (held over k)
            pl.BlockSpec((in_dim, th),     lambda i, k: (0, k)),  # W1 chunk (streams)
            pl.BlockSpec((1, th),          lambda i, k: (0, k)),  # b1 chunk
            pl.BlockSpec((th, out_p),      lambda i, k: (k, 0)),  # W2 chunk (streams)
            pl.BlockSpec((1, out_p),       lambda i, k: (0, 0)),  # b2
        ]
        out_spec = pl.BlockSpec((tm_eff, out_p), lambda i, k: (i, 0))
        if use_scratch:
            kernel = _mlp_kernel_tiled_scratch
            scratch = [pltpu.VMEM((tm_eff, out_p), jnp.float32)]
        else:
            kernel = _mlp_kernel_tiled_f32out   # accumulate directly in o_ref
            scratch = []
        out = pl.pallas_call(
            kernel,
            out_shape=jax.ShapeDtypeStruct((B_pad, out_p), out_dtype),
            grid_spec=pltpu.PrefetchScalarGridSpec(
                num_scalar_prefetch=0,
                grid=(grid_i, n_k),
                in_specs=in_specs,
                out_specs=out_spec,
                scratch_shapes=scratch,
            ),
            compiler_params=pltpu.CompilerParams(
                dimension_semantics=("parallel", "arbitrary"),
                vmem_limit_bytes=vmem_limit,
            ),
        )(x_p, w1p, b1p, w2p, b2p)

    return out[:B, :out_dim]


def mlp_layer(x, w1, b1, w2, b2, *, tm=512, compute_dtype=None,
              hidden_tile_cap=None, allow_fallback=True):
    """Convenience one-shot wrapper (pads/casts params on every call).

    For repeated forwards, call prepare_mlp_params() once and mlp_forward().
    """
    params = prepare_mlp_params(w1, b1, w2, b2, compute_dtype=compute_dtype,
                                hidden_tile_cap=hidden_tile_cap)
    return mlp_forward(x, params, tm=tm, allow_fallback=allow_fallback,
                       out_dtype=x.dtype)


# --------------------------------------------------------------------------
# Demo / self-test
# --------------------------------------------------------------------------
if __name__ == "__main__":
    def make(B, in_dim, hidden, out_dim, key):
        kx, kw1, kb1, kw2, kb2 = jax.random.split(key, 5)
        x = jax.random.normal(kx, (B, in_dim), dtype=jnp.float32)
        # params stored as (in, out), i.e. torch Linear weight transposed
        w1 = jax.random.normal(kw1, (in_dim, hidden), dtype=jnp.float32) * 0.1
        b1 = jax.random.normal(kb1, (1, hidden), dtype=jnp.float32) * 0.1
        w2 = jax.random.normal(kw2, (hidden, out_dim), dtype=jnp.float32) * 0.1
        b2 = jax.random.normal(kb2, (1, out_dim), dtype=jnp.float32) * 0.1
        return x, w1, b1, w2, b2

    def ref_mlp(x, w1, b1, w2, b2):
        return jnp.maximum(x @ w1 + b1, 0.0) @ w2 + b2

    # ---- small shapes (matching MLP_layer(input_dim=32, output_dim=16, hidden_dim=64))
    x, w1, b1, w2, b2 = make(16, 32, 64, 16, jax.random.PRNGKey(0))
    ref = ref_mlp(x, w1, b1, w2, b2)

    # small-problem fallback (plain jnp path)
    out = mlp_layer(x, w1, b1, w2, b2)
    jax.block_until_ready(out)
    assert out.shape == (16, 16)
    assert jnp.allclose(out, ref, atol=1e-5, rtol=1e-5)

    # force the Pallas kernel on the small shapes too (weight-resident path)
    out = mlp_layer(x, w1, b1, w2, b2, allow_fallback=False)
    jax.block_until_ready(out)
    assert jnp.allclose(out, ref, atol=1e-5, rtol=1e-5)

    # ---- medium shapes: batch tiling + ragged batch tail + weight-resident path
    x, w1, b1, w2, b2 = make(200, 96, 256, 80, jax.random.PRNGKey(1))
    ref = ref_mlp(x, w1, b1, w2, b2)

    params = prepare_mlp_params(w1, b1, w2, b2)          # pad/cast hoisted out
    out = mlp_forward(x, params)                         # f32, single hidden chunk
    jax.block_until_ready(out)
    assert out.shape == (200, 80)
    assert jnp.allclose(out, ref, atol=1e-4, rtol=1e-4)

    # bf16 MXU path (f32 accumulation) — looser tolerance by design
    params_bf16 = prepare_mlp_params(w1, b1, w2, b2, compute_dtype=jnp.bfloat16)
    out_bf16 = mlp_forward(x, params_bf16)
    jax.block_until_ready(out_bf16)
    assert out_bf16.dtype == jnp.float32
    assert jnp.allclose(out_bf16, ref, atol=5e-2, rtol=5e-2)

    # forced hidden-axis tiling (n_k > 1): f32 output accumulates in o_ref
    params_tiled = prepare_mlp_params(w1, b1, w2, b2, hidden_tile_cap=128)
    out_tiled = mlp_forward(x, params_tiled)
    jax.block_until_ready(out_tiled)
    assert jnp.allclose(out_tiled, ref, atol=1e-4, rtol=1e-4)

    # forced hidden-axis tiling with a bf16 output: scratch-accumulator kernel
    params_bf16_t = prepare_mlp_params(w1, b1, w2, b2,
                                       compute_dtype=jnp.bfloat16,
                                       hidden_tile_cap=128)
    out_bf16_t = mlp_forward(x.astype(jnp.bfloat16), params_bf16_t)
    jax.block_until_ready(out_bf16_t)
    assert out_bf16_t.dtype == jnp.bfloat16
    assert jnp.allclose(out_bf16_t.astype(jnp.float32), ref, atol=1e-1, rtol=1e-1)

    print("KERNEL_OK")
</pallas_src>

<mosaic_0001>
module attributes {stable_mosaic.version = 11 : i64} {
  func.func @_mlp_kernel_fused(%arg0: i32, %arg1: memref<16x32xf32, #tpu.memory_space<vmem>>, %arg2: memref<32x128xf32, #tpu.memory_space<vmem>>, %arg3: memref<1x128xf32, #tpu.memory_space<vmem>>, %arg4: memref<128x128xf32, #tpu.memory_space<vmem>>, %arg5: memref<1x128xf32, #tpu.memory_space<vmem>>, %arg6: memref<16x128xf32, #tpu.memory_space<vmem>>) attributes {dimension_semantics = [#tpu.dimension_semantics<parallel>], iteration_bounds = array<i64: 1>, scalar_prefetch = 0 : i64, scratch_operands = 0 : i64, tpu.core_type = #tpu.core_type<tc>, window_params = [{transform_indices = @transform_0, window_bounds = array<i64: 16, 32>}, {pipeline_mode = #tpu.pipeline_mode<synchronous>, transform_indices = @transform_1, window_bounds = array<i64: 32, 128>}, {pipeline_mode = #tpu.pipeline_mode<synchronous>, transform_indices = @transform_2, window_bounds = array<i64: 1, 128>}, {pipeline_mode = #tpu.pipeline_mode<synchronous>, transform_indices = @transform_3, window_bounds = array<i64: 128, 128>}, {pipeline_mode = #tpu.pipeline_mode<synchronous>, transform_indices = @transform_4, window_bounds = array<i64: 1, 128>}, {transform_indices = @transform_5, window_bounds = array<i64: 16, 128>}]} {
    %c0 = arith.constant 0 : index
    %c0_0 = arith.constant 0 : index
    %0 = vector.load %arg1[%c0, %c0_0] : memref<16x32xf32, #tpu.memory_space<vmem>>, vector<16x32xf32>
    %c0_1 = arith.constant 0 : index
    %c0_2 = arith.constant 0 : index
    %1 = vector.load %arg2[%c0_1, %c0_2] : memref<32x128xf32, #tpu.memory_space<vmem>>, vector<32x128xf32>
    %cst = arith.constant dense<0.000000e+00> : vector<16x128xf32>
    %2 = tpu.matmul %0, %1, %cst {dimension_numbers = #tpu.dot_dimension_numbers<[1], [0], [0], [1], [0, 0, 1, 1], [], []>} : vector<16x32xf32>, vector<32x128xf32>, vector<16x128xf32> -> vector<16x128xf32>
    %c0_3 = arith.constant 0 : index
    %c0_4 = arith.constant 0 : index
    %3 = vector.load %arg3[%c0_3, %c0_4] : memref<1x128xf32, #tpu.memory_space<vmem>>, vector<1x128xf32>
    %4 = vector.broadcast %3 : vector<1x128xf32> to vector<16x128xf32>
    %5 = arith.addf %2, %4 : vector<16x128xf32>
    %cst_5 = arith.constant 0.000000e+00 : f32
    %6 = vector.broadcast %cst_5 : f32 to vector<16x128xf32>
    %7 = arith.maximumf %5, %6 : vector<16x128xf32>
    %c0_6 = arith.constant 0 : index
    %c0_7 = arith.constant 0 : index
    %8 = vector.load %arg4[%c0_6, %c0_7] : memref<128x128xf32, #tpu.memory_space<vmem>>, vector<128x128xf32>
    %cst_8 = arith.constant dense<0.000000e+00> : vector<16x128xf32>
    %9 = tpu.matmul %7, %8, %cst_8 {dimension_numbers = #tpu.dot_dimension_numbers<[1], [0], [0], [1], [0, 0, 1, 1], [], []>} : vector<16x128xf32>, vector<128x128xf32>, vector<16x128xf32> -> vector<16x128xf32>
    %c0_9 = arith.constant 0 : index
    %c0_10 = arith.constant 0 : index
    %10 = vector.load %arg5[%c0_9, %c0_10] : memref<1x128xf32, #tpu.memory_space<vmem>>, vector<1x128xf32>
    %11 = vector.broadcast %10 : vector<1x128xf32> to vector<16x128xf32>
    %12 = arith.addf %9, %11 : vector<16x128xf32>
    %c0_11 = arith.constant 0 : index
    %c0_12 = arith.constant 0 : index
    %13 = vector.load %arg6[%c0_11, %c0_12] : memref<16x128xf32, #tpu.memory_space<vmem>>, vector<16x128xf32>
    tpu.vector_store %arg6[%c0_11, %c0_12], %12 {strides = array<i32>} : memref<16x128xf32, #tpu.memory_space<vmem>>, vector<16x128xf32>,
    return
  }
  func.func @transform_0(%arg0: i32) -> (i32, i32) {
    %c0_i32 = arith.constant 0 : i32
    %c0_i32_0 = arith.constant 0 : i32
    return %arg0, %c0_i32 : i32, i32
  }
  func.func @transform_1(%arg0: i32) -> (i32, i32) {
    %c0_i32 = arith.constant 0 : i32
    %c0_i32_0 = arith.constant 0 : i32
    %c0_i32_1 = arith.constant 0 : i32
    return %c0_i32, %c0_i32_0 : i32, i32
  }
  func.func @transform_2(%arg0: i32) -> (i32, i32) {
    %c0_i32 = arith.constant 0 : i32
    %c0_i32_0 = arith.constant 0 : i32
    %c0_i32_1 = arith.constant 0 : i32
    return %c0_i32, %c0_i32_0 : i32, i32
  }
  func.func @transform_3(%arg0: i32) -> (i32, i32) {
    %c0_i32 = arith.constant 0 : i32
    %c0_i32_0 = arith.constant 0 : i32
    %c0_i32_1 = arith.constant 0 : i32
    return %c0_i32, %c0_i32_0 : i32, i32
  }
  func.func @transform_4(%arg0: i32) -> (i32, i32) {
    %c0_i32 = arith.constant 0 : i32
    %c0_i32_0 = arith.constant 0 : i32
    %c0_i32_1 = arith.constant 0 : i32
    return %c0_i32, %c0_i32_0 : i32, i32
  }
  func.func @transform_5(%arg0: i32) -> (i32, i32) {
    %c0_i32 = arith.constant 0 : i32
    %c0_i32_0 = arith.constant 0 : i32
    return %arg0, %c0_i32 : i32, i32
  }
}

</mosaic_0001>

<llo_original>
// kernel: tpu_custom_call.1
$region0: #{tpu_custom_call.1}
  #allocation0 [shape = 'u32[]', space=smem, size = 0x4, offset = 0x4, fixed_abs, tag = 'smem constant byte address 0x4 - core index']
  #allocation1 [shape = 'u32[144,128]{1,0:T(1,128)}', space=vmem, size = 0x12000, scoped, tag = 'internal scratch']
  %s0 = inlined_call_operand.hbm [shape: f32[16,32], index: 0, kind: input, shape index: {}]
  %s1 = inlined_call_operand.hbm [shape: f32[32,128], index: 1, kind: input, shape index: {}]
  %s2 = inlined_call_operand.vmem [shape: f32[1,128], index: 2, kind: input, shape index: {}]
  %s3 = inlined_call_operand.hbm [shape: f32[128,128], index: 3, kind: input, shape index: {}]
  %s4 = inlined_call_operand.vmem [shape: f32[1,128], index: 4, kind: input, shape index: {}]
  %s5 = inlined_call_operand.hbm [shape: f32[16,128], index: 5, kind: output, shape index: {}]
  %s6 = sld [smem:[#allocation0]]
  $region42: #{tpu_custom_call.1} parent=0
    _
  %s8 = ssub.s32 1, %s6
  %s9 = scalar_select 0, %s8, %s6
  $region1: #{tpu_custom_call.1} parent=0
    #allocation2 [shape = 'u8[8192]{0}', space=vmem, size = 0x2000, scoped, tag = 'input window, operand 0, single buffered']
    #allocation3 [shape = 's32[1]{0}', space=sflag, size = 0x4, scoped, tag = 'scoped memory for tpu_custom_call.1']
    #allocation4 [shape = 's32[1]{0}', space=sflag, size = 0x4, scoped, tag = 'scoped memory for tpu_custom_call.1']
    #allocation5 [shape = 'u8[16384]{0}', space=vmem, size = 0x4000, scoped, tag = 'input window, operand 1, single buffered']
    #allocation6 [shape = 's32[1]{0}', space=sflag, size = 0x4, scoped, tag = 'scoped memory for tpu_custom_call.1']
    #allocation7 [shape = 'u8[65536]{0}', space=vmem, size = 0x10000, scoped, tag = 'input window, operand 3, single buffered']
    #allocation8 [shape = 'u8[8192]{0}', space=vmem, size = 0x2000, scoped, tag = 'output window, operand 0, single buffered']
    %10 = vsyncpa [#allocation3], 0
    %11 = vsyncpa [#allocation6], 0
    %12 = vsyncpa [#allocation4], 0
    // Predicated region
    $region2: #{tpu_custom_call.1} parent=1 // pred_check
      _
    $region3: #{tpu_custom_call.1} parent=1 // pred_check_branch
      %14 = sbr.rel (0) target = $region5
    $region4: #{tpu_custom_call.1} parent=1 // pred_region
      %s16 = ssub.s32 256, 256
      %17 = vsyncadd [#allocation3], %s16
      %s18 = sshll.u32 [#allocation2], 4
      %s19 = int_to_ptr.vmem [resolvable:$true] %s18
      %24 = dma.hbm_to_vmem [thread:$0]  %s0, 256, %s19, [#allocation3], 128, 128, 8
    $region5: #{tpu_custom_call.1} parent=1 // pred_fallthru
      _
    // Predicated region
    $region6: #{tpu_custom_call.1} parent=1 // pred_check
      _
    $region7: #{tpu_custom_call.1} parent=1 // pred_check_branch
      %26 = sbr.rel (0) target = $region9
    $region8: #{tpu_custom_call.1} parent=1 // pred_region
      %s28 = ssub.s32 512, 512
      %29 = vsyncadd [#allocation6], %s28
      %s30 = sshll.u32 [#allocation5], 4
      %s31 = int_to_ptr.vmem [resolvable:$true] %s30
      %36 = dma.hbm_to_vmem [thread:$0]  %s1, 512, %s31, [#allocation6], 128, 128, 8
    $region9: #{tpu_custom_call.1} parent=1 // pred_fallthru
      _
    // Predicated region
    $region10: #{tpu_custom_call.1} parent=1 // pred_check
      _
    $region11: #{tpu_custom_call.1} parent=1 // pred_check_branch
      %38 = sbr.rel (0) target = $region13
    $region12: #{tpu_custom_call.1} parent=1 // pred_region
      _
    $region13: #{tpu_custom_call.1} parent=1 // pred_fallthru
      _
    // Predicated region
    $region14: #{tpu_custom_call.1} parent=1 // pred_check
      _
    $region15: #{tpu_custom_call.1} parent=1 // pred_check_branch
      %40 = sbr.rel (0) target = $region17
    $region16: #{tpu_custom_call.1} parent=1 // pred_region
      %s42 = ssub.s32 2048, 2048
      %43 = vsyncadd [#allocation6], %s42
      %s44 = sshll.u32 [#allocation7], 4
      %s45 = int_to_ptr.vmem [resolvable:$true] %s44
      %50 = dma.hbm_to_vmem [thread:$0]  %s3, 2048, %s45, [#allocation6], 128, 128, 8
    $region17: #{tpu_custom_call.1} parent=1 // pred_fallthru
      _
    // Predicated region
    $region18: #{tpu_custom_call.1} parent=1 // pred_check
      _
    $region19: #{tpu_custom_call.1} parent=1 // pred_check_branch
      %52 = sbr.rel (0) target = $region21
    $region20: #{tpu_custom_call.1} parent=1 // pred_region
      _
    $region21: #{tpu_custom_call.1} parent=1 // pred_fallthru
      _
    // Predicated region
    $region22: #{tpu_custom_call.1} parent=1 // pred_check
      _
    $region23: #{tpu_custom_call.1} parent=1 // pred_check_branch
      %54 = sbr.rel (0) target = $region25
    $region24: #{tpu_custom_call.1} parent=1 // pred_region
      %55 = dma.done [#allocation3], 256
    $region25: #{tpu_custom_call.1} parent=1 // pred_fallthru
      _
    // Predicated region
    $region26: #{tpu_custom_call.1} parent=1 // pred_check
      _
    $region27: #{tpu_custom_call.1} parent=1 // pred_check_branch
      %57 = sbr.rel (0) target = $region29
    $region28: #{tpu_custom_call.1} parent=1 // pred_region
      %58 = dma.done [#allocation6], 512
    $region29: #{tpu_custom_call.1} parent=1 // pred_fallthru
      _
    // Predicated region
    $region30: #{tpu_custom_call.1} parent=1 // pred_check
      _
    $region31: #{tpu_custom_call.1} parent=1 // pred_check_branch
      %60 = sbr.rel (0) target = $region33
    $region32: #{tpu_custom_call.1} parent=1 // pred_region
      %61 = dma.done [#allocation6], 2048
    $region33: #{tpu_custom_call.1} parent=1 // pred_fallthru
      _
    %v62 = vld [vmem:[#allocation2] sm:$0xff]
    %v63 = vld [vmem:[#allocation2 + $0x8] sm:$0xff]
    %v64 = vld [vmem:[#allocation5] sm:$0xff]
    %v65 = vld [vmem:[#allocation5 + $0x8] sm:$0xff]
    %v66 = vld [vmem:[#allocation5 + $0x10] sm:$0xff]
    %v67 = vld [vmem:[#allocation5 + $0x18] sm:$0xff]
    %v68 = vld [vmem:[%s2] sm:$0x1]
    %v70 = vlaneseq
    %v71 = vshrl.u32 %v70, 7
    %v72 = vsub.s32 0, %v71
    %v73 = vrot.slane %v68, %v72
    %vm75 = vcmask 261120
    %v77 = vsel %vm75, %v62, 0
    %v80 = vsel %vm75, %v63, 0
    %82 = vmatprep.subr.mxu0 0.0
    %83 = vmatpush1.msra.mxu0 %v64
    %84 = vmatprep.subr.mxu0 0.0
    %85 = vmatpush1.msra.mxu0 %v65
    %86 = vmatprep.subr.mxu0 0.0
    %87 = vmatpush1.msra.mxu0 %v66
    %88 = vmatprep.subr.mxu0 0.0
    %89 = vmatpush1.msra.mxu0 %v67
    %90 = vmatprep.subr.mxu0 0.0
    %91 = vmatpush1.msra.mxu0 0.0
    %92 = vmatprep.subr.mxu0 0.0
    %93 = vmatpush1.msra.mxu0 0.0
    %94 = vmatprep.subr.mxu0 0.0
    %95 = vmatpush1.msra.mxu0 0.0
    %96 = vmatprep.subr.mxu0 0.0
    %97 = vmatpush1.msra.mxu0 0.0
    %98 = vmatprep.subr.mxu0 0.0
    %99 = vmatpush1.msra.mxu0 0.0
    %100 = vmatprep.subr.mxu0 0.0
    %101 = vmatpush1.msra.mxu0 0.0
    %102 = vmatprep.subr.mxu0 0.0
    %103 = vmatpush1.msra.mxu0 0.0
    %104 = vmatprep.subr.mxu0 0.0
    %105 = vmatpush1.msra.mxu0 0.0
    %106 = vmatprep.subr.mxu0 0.0
    %107 = vmatpush1.msra.mxu0 0.0
    %108 = vmatprep.subr.mxu0 0.0
    %109 = vmatpush1.msra.mxu0 0.0
    %110 = vmatprep.subr.mxu0 0.0
    %111 = vmatpush1.msra.mxu0 0.0
    %112 = vmatprep.subr.mxu0 0.0
    %113 = vmatpush1.msra.mxu0 0.0
    %114 = vmatprep.subr.mxu0 0.0
    %115 = vmatpush1.msra.mxu0 0.0
    %116 = vmatprep.subr.mxu0 0.0
    %117 = vmatpush1.msra.mxu0 0.0
    %118 = vmatprep.subr.mxu0 0.0
    %119 = vmatpush1.msra.mxu0 0.0
    %120 = vmatprep.subr.mxu0 0.0
    %121 = vmatpush1.msra.mxu0 0.0
    %122 = vmatprep.subr.mxu0 0.0
    %123 = vmatpush1.msra.mxu0 0.0
    %124 = vmatprep.subr.mxu0 0.0
    %125 = vmatpush1.msra.mxu0 0.0
    %126 = vmatprep.subr.mxu0 0.0
    %127 = vmatpush1.msra.mxu0 0.0
    %128 = vmatprep.subr.mxu0 0.0
    %129 = vmatpush1.msra.mxu0 0.0
    %130 = vmatprep.subr.mxu0 0.0
    %131 = vmatpush1.msra.mxu0 0.0
    %132 = vmatprep.subr.mxu0 0.0
    %133 = vmatpush1.msra.mxu0 0.0
    %134 = vmatprep.subr.mxu0 0.0
    %135 = vmatpush1.msra.mxu0 0.0
    %136 = vmatprep.subr.mxu0 0.0
    %137 = vmatpush1.msra.mxu0 0.0
    %138 = vmatprep.subr.mxu0 0.0
    %139 = vmatpush1.msra.mxu0 0.0
    %140 = vmatprep.subr.mxu0 0.0
    %141 = vmatpush1.msra.mxu0 0.0
    %142 = vmatprep.subr.mxu0 0.0
    %143 = vmatpush1.msra.mxu0 0.0
    %144 = vmatprep.subr.mxu0 0.0
    %145 = vmatpush1.msra.mxu0 0.0
    %146 = vmatprep.mubr.f32.mxu0 0.0
    %147 = vmatmul.mubr.f32.gmra.mrb[0].mxu0 %v77
    %v148 = vpop.f32.mrb[0].mxu0
    %v149 = vadd.f32 %v73, %v148
    %v150 = vpop.f32.mrb[0].mxu0
    %151 = vmatprep.mubr.f32.mxu0 0.0
    %152 = vmatmul.mubr.f32.gmra.mrb[0].mxu0 %v80
    %v153 = vpop.f32.mrb[0].mxu0
    %v154 = vadd.f32 %v73, %v153
    %v155 = vpop.f32.mrb[0].mxu0
    %156 = vdwg.mxu0
    %v157 = vmax.f32 %v149, 0.0
    %v158 = vmax.f32 %v154, 0.0
    %v159 = vld [vmem:[#allocation7] sm:$0xff]
    %v160 = vld [vmem:[#allocation7 + $0x8] sm:$0xff]
    %v161 = vld [vmem:[#allocation7 + $0x10] sm:$0xff]
    %v162 = vld [vmem:[#allocation7 + $0x18] sm:$0xff]
    %v163 = vld [vmem:[#allocation7 + $0x20] sm:$0xff]
    %v164 = vld [vmem:[#allocation7 + $0x28] sm:$0xff]
    %v165 = vld [vmem:[#allocation7 + $0x30] sm:$0xff]
    %v166 = vld [vmem:[#allocation7 + $0x38] sm:$0xff]
    %v167 = vld [vmem:[#allocation7 + $0x40] sm:$0xff]
    %v168 = vld [vmem:[#allocation7 + $0x48] sm:$0xff]
    %v169 = vld [vmem:[#allocation7 + $0x50] sm:$0xff]
    %v170 = vld [vmem:[#allocation7 + $0x58] sm:$0xff]
    %v171 = vld [vmem:[#allocation7 + $0x60] sm:$0xff]
    %v172 = vld [vmem:[#allocation7 + $0x68] sm:$0xff]
    %v173 = vld [vmem:[#allocation7 + $0x70] sm:$0xff]
    %v174 = vld [vmem:[#allocation7 + $0x78] sm:$0xff]
    %v175 = vld [vmem:[%s4] sm:$0x1]
    %v177 = vlaneseq
    %v178 = vshrl.u32 %v177, 7
    %v179 = vsub.s32 0, %v178
    %v180 = vrot.slane %v175, %v179
    %182 = vmatprep.subr.mxu0 0.0
    %183 = vmatpush1.msra.mxu0 %v159
    %184 = vmatprep.subr.mxu0 0.0
    %185 = vmatpush1.msra.mxu0 %v160
    %186 = vmatprep.subr.mxu0 0.0
    %187 = vmatpush1.msra.mxu0 %v161
    %188 = vmatprep.subr.mxu0 0.0
    %189 = vmatpush1.msra.mxu0 %v162
    %190 = vmatprep.subr.mxu0 0.0
    %191 = vmatpush1.msra.mxu0 %v163
    %192 = vmatprep.subr.mxu0 0.0
    %193 = vmatpush1.msra.mxu0 %v164
    %194 = vmatprep.subr.mxu0 0.0
    %195 = vmatpush1.msra.mxu0 %v165
    %196 = vmatprep.subr.mxu0 0.0
    %197 = vmatpush1.msra.mxu0 %v166
    %198 = vmatprep.subr.mxu0 0.0
    %199 = vmatpush1.msra.mxu0 %v167
    %200 = vmatprep.subr.mxu0 0.0
    %201 = vmatpush1.msra.mxu0 %v168
    %202 = vmatprep.subr.mxu0 0.0
    %203 = vmatpush1.msra.mxu0 %v169
    %204 = vmatprep.subr.mxu0 0.0
    %205 = vmatpush1.msra.mxu0 %v170
    %206 = vmatprep.subr.mxu0 0.0
    %207 = vmatpush1.msra.mxu0 %v171
    %208 = vmatprep.subr.mxu0 0.0
    %209 = vmatpush1.msra.mxu0 %v172
    %210 = vmatprep.subr.mxu0 0.0
    %211 = vmatpush1.msra.mxu0 %v173
    %212 = vmatprep.subr.mxu0 0.0
    %213 = vmatpush1.msra.mxu0 %v174
    %214 = vmatprep.subr.mxu0 0.0
    %215 = vmatpush1.msra.mxu0 0.0
    %216 = vmatprep.subr.mxu0 0.0
    %217 = vmatpush1.msra.mxu0 0.0
    %218 = vmatprep.subr.mxu0 0.0
    %219 = vmatpush1.msra.mxu0 0.0
    %220 = vmatprep.subr.mxu0 0.0
    %221 = vmatpush1.msra.mxu0 0.0
    %222 = vmatprep.subr.mxu0 0.0
    %223 = vmatpush1.msra.mxu0 0.0
    %224 = vmatprep.subr.mxu0 0.0
    %225 = vmatpush1.msra.mxu0 0.0
    %226 = vmatprep.subr.mxu0 0.0
    %227 = vmatpush1.msra.mxu0 0.0
    %228 = vmatprep.subr.mxu0 0.0
    %229 = vmatpush1.msra.mxu0 0.0
    %230 = vmatprep.subr.mxu0 0.0
    %231 = vmatpush1.msra.mxu0 0.0
    %232 = vmatprep.subr.mxu0 0.0
    %233 = vmatpush1.msra.mxu0 0.0
    %234 = vmatprep.subr.mxu0 0.0
    %235 = vmatpush1.msra.mxu0 0.0
    %236 = vmatprep.subr.mxu0 0.0
    %237 = vmatpush1.msra.mxu0 0.0
    %238 = vmatprep.subr.mxu0 0.0
    %239 = vmatpush1.msra.mxu0 0.0
    %240 = vmatprep.subr.mxu0 0.0
    %241 = vmatpush1.msra.mxu0 0.0
    %242 = vmatprep.subr.mxu0 0.0
    %243 = vmatpush1.msra.mxu0 0.0
    %244 = vmatprep.subr.mxu0 0.0
    %245 = vmatpush1.msra.mxu0 0.0
    %246 = vmatprep.mubr.f32.mxu0 0.0
    %247 = vmatmul.mubr.f32.gmra.mrb[0].mxu0 %v157
    %v248 = vpop.f32.mrb[0].mxu0
    %v249 = vadd.f32 %v180, %v248
    %v250 = vpop.f32.mrb[0].mxu0
    %251 = vmatprep.mubr.f32.mxu0 0.0
    %252 = vmatmul.mubr.f32.gmra.mrb[0].mxu0 %v158
    %v253 = vpop.f32.mrb[0].mxu0
    %v254 = vadd.f32 %v180, %v253
    %v255 = vpop.f32.mrb[0].mxu0
    %256 = vdwg.mxu0
    %257 = vst [vmem:[#allocation8] sm:$0xff] %v249
    %258 = vst [vmem:[#allocation8 + $0x8] sm:$0xff] %v254
    // Predicated region
    $region34: #{tpu_custom_call.1} parent=1 // pred_check
      _
    $region35: #{tpu_custom_call.1} parent=1 // pred_check_branch
      %260 = sbr.rel (0) target = $region37
    $region36: #{tpu_custom_call.1} parent=1 // pred_region
      %s262 = ssub.s32 256, 256
      %263 = vsyncadd [#allocation4], %s262
      %s264 = sshll.u32 [#allocation8], 4
      %s265 = int_to_ptr.vmem [resolvable:$true] %s264
      %270 = dma.vmem_to_hbm [thread:$0]  %s265, 256, %s5, [#allocation4], 128, 128, 8
    $region37: #{tpu_custom_call.1} parent=1 // pred_fallthru
      _
    // Predicated region
    $region38: #{tpu_custom_call.1} parent=1 // pred_check
      _
    $region39: #{tpu_custom_call.1} parent=1 // pred_check_branch
      %272 = sbr.rel (0) target = $region41
    $region40: #{tpu_custom_call.1} parent=1 // pred_region
      %273 = dma.done [#allocation4], 256
    $region41: #{tpu_custom_call.1} parent=1 // pred_fallthru
      _
    %274 = vsyncpa [#allocation3], 1
    %275 = vsyncpa [#allocation6], 1
    %276 = vsyncpa [#allocation4], 1

</llo_original>
